<compile_context>
chip_gen: v5e
topology: v5e:2x2
jax: 0.10.0
libtpu: 0.0.40
codegen_flags: <defaults>
</compile_context>

<pallas_src>
import functools
import math

import jax
import jax.numpy as jnp
from jax.experimental import pallas as pl
from jax.experimental.pallas import tpu as pltpu


def _clusterling_kernel(x_ref, wt_ref, wsq_ref, o_ref, *, alpha):
    x = x_ref[...]            # (tb, F)  f32
    wt = wt_ref[...]          # (F, C)   f32, grid-invariant (resident)
    wsq = wsq_ref[...]        # (1, C)   f32, grid-invariant (resident)

    # Squared distances via the MXU decomposition; clamp cancellation noise.
    x_sq = jnp.sum(x * x, axis=-1, keepdims=True)                    # (tb, 1)
    cross = jnp.dot(x, wt, preferred_element_type=jnp.float32)        # (tb, C) on MXU
    d = jnp.maximum(x_sq + wsq - 2.0 * cross, 0.0)                    # (tb, C), d >= 0

    # q = (1 + d/alpha)^(-(alpha+1)/2): EUP approx reciprocal, then pow via
    # exp/log (q in (0, 1], so log is safe) only when the exponent != 1.
    q = pl.reciprocal(1.0 + d * (1.0 / alpha), approx=True)
    expo = (alpha + 1.0) / 2.0
    if expo != 1.0:  # exact Python float compare; alpha=1.0 skips the pow
        q = jnp.exp(expo * jnp.log(q))

    # Row-normalize with an exact divide (EUP slack makes this free) so the
    # output rows sum to 1 up to fp32 rounding.
    o_ref[...] = (q / jnp.sum(q, axis=-1, keepdims=True)).astype(o_ref.dtype)


def clusterling_forward(x, weight, alpha=1.0, *, block_b=4096):
    """x: (B, in_features), weight: (out_features, in_features) -> (B, out_features)."""
    x = x.astype(jnp.float32)
    w = weight.astype(jnp.float32)
    B, F = x.shape
    C, F2 = w.shape
    assert F == F2, "weight must be (out_features, in_features)"

    # Grid-invariant weight-derived tensors, computed once host-side.
    w_t = w.T                                   # (F, C)
    w_sq = jnp.sum(w * w, axis=1)[None, :]      # (1, C)

    # Batch tile: whole batch if small, otherwise a multiple-of-8 tile capped
    # at block_b (<= 4096 keeps padded, double-buffered in+out blocks within
    # v5e's 16 MiB scoped-VMEM default and v7x's tighter physical VMEM).
    tb = B if B <= block_b else block_b
    grid = (pl.cdiv(B, tb),)

    kern = functools.partial(_clusterling_kernel, alpha=float(alpha))
    return pl.pallas_call(
        kern,
        out_shape=jax.ShapeDtypeStruct((B, C), jnp.float32),
        grid=grid,
        in_specs=[
            pl.BlockSpec((tb, F), lambda i: (i, 0)),   # batch-tiled activations
            pl.BlockSpec((F, C), lambda i: (0, 0)),    # w^T stays VMEM-resident
            pl.BlockSpec((1, C), lambda i: (0, 0)),    # ||w||^2 stays VMEM-resident
        ],
        out_specs=pl.BlockSpec((tb, C), lambda i: (i, 0)),
        compiler_params=pltpu.CompilerParams(
            dimension_semantics=("parallel",)),
    )(x, w_t, w_sq)


def clusterling_reference(x, weight, alpha=1.0):
    """Pure-JAX reference (mirrors the PyTorch forward exactly)."""
    diff = x[:, None, :] - weight[None, :, :]
    d = jnp.sum(diff * diff, axis=-1)
    q = 1.0 / (1.0 + d / alpha)
    q = q ** ((alpha + 1.0) / 2.0)
    return q / jnp.sum(q, axis=1, keepdims=True)


if __name__ == "__main__":
    in_features, out_features = 10, 10

    key = jax.random.PRNGKey(0)
    kx, kw, kx2 = jax.random.split(key, 3)

    # Xavier-uniform init of the cluster centers, like nn.init.xavier_uniform_.
    bound = math.sqrt(6.0 / (in_features + out_features))
    weight = jax.random.uniform(
        kw, (out_features, in_features), jnp.float32, -bound, bound)

    # Small case: batch=2 (single grid step), alpha=1.0 (fast path, no pow).
    x = jax.random.normal(kx, (2, in_features), jnp.float32)
    q = clusterling_forward(x, weight, alpha=1.0)
    jax.block_until_ready(q)
    q_ref = clusterling_reference(x, weight, alpha=1.0)
    assert q.shape == (2, out_features)
    assert jnp.allclose(jnp.sum(q, axis=1), 1.0, atol=1e-4)
    assert jnp.allclose(q, q_ref, rtol=1e-2, atol=1e-3)

    # alpha != 1 exercises the exp/log pow path (and the d >= 0 clamp).
    q_a = clusterling_forward(x, weight, alpha=2.0)
    jax.block_until_ready(q_a)
    q_a_ref = clusterling_reference(x, weight, alpha=2.0)
    assert jnp.allclose(jnp.sum(q_a, axis=1), 1.0, atol=1e-4)
    assert jnp.allclose(q_a, q_a_ref, rtol=1e-2, atol=1e-3)

    # Larger batch: exercises the tiled "parallel" grid (grid=(2,), tb=128)
    # including a boundary case check with B a multiple of the tile.
    x2 = jax.random.normal(kx2, (256, in_features), jnp.float32)
    q2 = clusterling_forward(x2, weight, alpha=1.0, block_b=128)
    jax.block_until_ready(q2)
    q2_ref = clusterling_reference(x2, weight, alpha=1.0)
    assert q2.shape == (256, out_features)
    assert jnp.allclose(jnp.sum(q2, axis=1), 1.0, atol=1e-4)
    assert jnp.allclose(q2, q2_ref, rtol=1e-2, atol=1e-3)

    print("KERNEL_OK")
</pallas_src>

<mosaic_0001>
module attributes {stable_mosaic.version = 11 : i64} {
  func.func @_clusterling_kernel(%arg0: i32, %arg1: memref<2x10xf32, #tpu.memory_space<vmem>>, %arg2: memref<10x10xf32, #tpu.memory_space<vmem>>, %arg3: memref<1x10xf32, #tpu.memory_space<vmem>>, %arg4: memref<2x10xf32, #tpu.memory_space<vmem>>) attributes {dimension_semantics = [#tpu.dimension_semantics<parallel>], iteration_bounds = array<i64: 1>, scalar_prefetch = 0 : i64, scratch_operands = 0 : i64, tpu.core_type = #tpu.core_type<tc>, window_params = [{transform_indices = @transform_0, window_bounds = array<i64: 2, 10>}, {pipeline_mode = #tpu.pipeline_mode<synchronous>, transform_indices = @transform_1, window_bounds = array<i64: 10, 10>}, {pipeline_mode = #tpu.pipeline_mode<synchronous>, transform_indices = @transform_2, window_bounds = array<i64: 1, 10>}, {transform_indices = @transform_3, window_bounds = array<i64: 2, 10>}]} {
    %c0 = arith.constant 0 : index
    %c0_0 = arith.constant 0 : index
    %0 = vector.load %arg1[%c0, %c0_0] : memref<2x10xf32, #tpu.memory_space<vmem>>, vector<2x10xf32>
    %c0_1 = arith.constant 0 : index
    %c0_2 = arith.constant 0 : index
    %1 = vector.load %arg2[%c0_1, %c0_2] : memref<10x10xf32, #tpu.memory_space<vmem>>, vector<10x10xf32>
    %c0_3 = arith.constant 0 : index
    %c0_4 = arith.constant 0 : index
    %2 = vector.load %arg3[%c0_3, %c0_4] : memref<1x10xf32, #tpu.memory_space<vmem>>, vector<1x10xf32>
    %3 = arith.mulf %0, %0 : vector<2x10xf32>
    %cst = arith.constant dense<0.000000e+00> : vector<2xf32>
    %4 = vector.multi_reduction <add>, %3, %cst [1] : vector<2x10xf32> to vector<2xf32>
    %5 = vector.shape_cast %4 : vector<2xf32> to vector<2x1xf32>
    %cst_5 = arith.constant dense<0.000000e+00> : vector<2x10xf32>
    %6 = tpu.matmul %0, %1, %cst_5 {dimension_numbers = #tpu.dot_dimension_numbers<[1], [0], [0], [1], [0, 0, 1, 1], [], []>} : vector<2x10xf32>, vector<10x10xf32>, vector<2x10xf32> -> vector<2x10xf32>
    %7 = vector.broadcast %5 : vector<2x1xf32> to vector<2x10xf32>
    %8 = vector.broadcast %2 : vector<1x10xf32> to vector<2x10xf32>
    %9 = arith.addf %7, %8 : vector<2x10xf32>
    %cst_6 = arith.constant 2.000000e+00 : f32
    %10 = vector.broadcast %cst_6 : f32 to vector<2x10xf32>
    %11 = arith.mulf %10, %6 : vector<2x10xf32>
    %12 = arith.subf %9, %11 : vector<2x10xf32>
    %cst_7 = arith.constant 0.000000e+00 : f32
    %13 = vector.broadcast %cst_7 : f32 to vector<2x10xf32>
    %14 = arith.maximumf %12, %13 : vector<2x10xf32>
    %cst_8 = arith.constant 1.000000e+00 : f32
    %15 = vector.broadcast %cst_8 : f32 to vector<2x10xf32>
    %16 = arith.mulf %14, %15 : vector<2x10xf32>
    %cst_9 = arith.constant 1.000000e+00 : f32
    %17 = vector.broadcast %cst_9 : f32 to vector<2x10xf32>
    %18 = arith.addf %17, %16 : vector<2x10xf32>
    %19 = tpu.reciprocal %18 {approx = true} : vector<2x10xf32> -> vector<2x10xf32>
    %cst_10 = arith.constant dense<0.000000e+00> : vector<2xf32>
    %20 = vector.multi_reduction <add>, %19, %cst_10 [1] : vector<2x10xf32> to vector<2xf32>
    %21 = vector.shape_cast %20 : vector<2xf32> to vector<2x1xf32>
    %22 = vector.broadcast %21 : vector<2x1xf32> to vector<2x10xf32>
    %23 = arith.divf %19, %22 : vector<2x10xf32>
    %c0_11 = arith.constant 0 : index
    %c0_12 = arith.constant 0 : index
    %24 = vector.load %arg4[%c0_11, %c0_12] : memref<2x10xf32, #tpu.memory_space<vmem>>, vector<2x10xf32>
    tpu.vector_store %arg4[%c0_11, %c0_12], %23 {strides = array<i32>} : memref<2x10xf32, #tpu.memory_space<vmem>>, vector<2x10xf32>,
    return
  }
  func.func @transform_0(%arg0: i32) -> (i32, i32) {
    %c0_i32 = arith.constant 0 : i32
    %c0_i32_0 = arith.constant 0 : i32
    return %arg0, %c0_i32 : i32, i32
  }
  func.func @transform_1(%arg0: i32) -> (i32, i32) {
    %c0_i32 = arith.constant 0 : i32
    %c0_i32_0 = arith.constant 0 : i32
    %c0_i32_1 = arith.constant 0 : i32
    return %c0_i32, %c0_i32_0 : i32, i32
  }
  func.func @transform_2(%arg0: i32) -> (i32, i32) {
    %c0_i32 = arith.constant 0 : i32
    %c0_i32_0 = arith.constant 0 : i32
    %c0_i32_1 = arith.constant 0 : i32
    return %c0_i32, %c0_i32_0 : i32, i32
  }
  func.func @transform_3(%arg0: i32) -> (i32, i32) {
    %c0_i32 = arith.constant 0 : i32
    %c0_i32_0 = arith.constant 0 : i32
    return %arg0, %c0_i32 : i32, i32
  }
}

</mosaic_0001>

<llo_original>
// kernel: tpu_custom_call.1
$region0: #{tpu_custom_call.1}
  #allocation0 [shape = 'u32[]', space=smem, size = 0x4, offset = 0x4, fixed_abs, tag = 'smem constant byte address 0x4 - core index']
  #allocation1 [shape = 'u32[72,128]{1,0:T(1,128)}', space=vmem, size = 0x9000, scoped, tag = 'internal scratch']
  %s0 = inlined_call_operand.hbm [shape: f32[2,10], index: 0, kind: input, shape index: {}]
  %s1 = inlined_call_operand.hbm [shape: f32[10,10], index: 1, kind: input, shape index: {}]
  %s2 = inlined_call_operand.vmem [shape: f32[1,10], index: 2, kind: input, shape index: {}]
  %s3 = inlined_call_operand.hbm [shape: f32[2,10], index: 3, kind: output, shape index: {}]
  %s4 = sld [smem:[#allocation0]]
  $region30: #{tpu_custom_call.1} parent=0
    _
  %s6 = ssub.s32 1, %s4
  %s7 = scalar_select 0, %s6, %s4
  $region1: #{tpu_custom_call.1} parent=0
    #allocation2 [shape = 'u8[1024]{0}', space=vmem, size = 0x400, scoped, tag = 'input window, operand 0, single buffered']
    #allocation3 [shape = 's32[1]{0}', space=sflag, size = 0x4, scoped, tag = 'scoped memory for tpu_custom_call.1']
    #allocation4 [shape = 's32[1]{0}', space=sflag, size = 0x4, scoped, tag = 'scoped memory for tpu_custom_call.1']
    #allocation5 [shape = 'u8[8192]{0}', space=vmem, size = 0x2000, scoped, tag = 'input window, operand 1, single buffered']
    #allocation6 [shape = 's32[1]{0}', space=sflag, size = 0x4, scoped, tag = 'scoped memory for tpu_custom_call.1']
    #allocation7 [shape = 'u8[1024]{0}', space=vmem, size = 0x400, scoped, tag = 'output window, operand 0, single buffered']
    %8 = vsyncpa [#allocation3], 0
    %9 = vsyncpa [#allocation6], 0
    %10 = vsyncpa [#allocation4], 0
    // Predicated region
    $region2: #{tpu_custom_call.1} parent=1 // pred_check
      _
    $region3: #{tpu_custom_call.1} parent=1 // pred_check_branch
      %12 = sbr.rel (0) target = $region5
    $region4: #{tpu_custom_call.1} parent=1 // pred_region
      %14 = vsyncadd [#allocation3], 0
      %s16 = sshll.u32 %s0, 4
      %s17 = int_to_ptr.hbm [resolvable:$true] %s16
      %s18 = sshll.u32 [#allocation2], 4
      %s19 = int_to_ptr.vmem [resolvable:$true] %s18
      %21 = dma.hbm_to_vmem [thread:$0]  %s17, 32, %s19, [#allocation3]
    $region5: #{tpu_custom_call.1} parent=1 // pred_fallthru
      _
    // Predicated region
    $region6: #{tpu_custom_call.1} parent=1 // pred_check
      _
    $region7: #{tpu_custom_call.1} parent=1 // pred_check_branch
      %23 = sbr.rel (0) target = $region9
    $region8: #{tpu_custom_call.1} parent=1 // pred_region
      %25 = vsyncadd [#allocation6], 0
      %s26 = sshll.u32 %s1, 4
      %s27 = int_to_ptr.hbm [resolvable:$true] %s26
      %s28 = sshll.u32 [#allocation5], 4
      %s29 = int_to_ptr.vmem [resolvable:$true] %s28
      %34 = dma.hbm_to_vmem [thread:$0]  %s27, 256, %s29, [#allocation6], 128, 128, 8
    $region9: #{tpu_custom_call.1} parent=1 // pred_fallthru
      _
    // Predicated region
    $region10: #{tpu_custom_call.1} parent=1 // pred_check
      _
    $region11: #{tpu_custom_call.1} parent=1 // pred_check_branch
      %36 = sbr.rel (0) target = $region13
    $region12: #{tpu_custom_call.1} parent=1 // pred_region
      _
    $region13: #{tpu_custom_call.1} parent=1 // pred_fallthru
      _
    // Predicated region
    $region14: #{tpu_custom_call.1} parent=1 // pred_check
      _
    $region15: #{tpu_custom_call.1} parent=1 // pred_check_branch
      %38 = sbr.rel (0) target = $region17
    $region16: #{tpu_custom_call.1} parent=1 // pred_region
      %40 = dma.done [#allocation3], 32
    $region17: #{tpu_custom_call.1} parent=1 // pred_fallthru
      _
    // Predicated region
    $region18: #{tpu_custom_call.1} parent=1 // pred_check
      _
    $region19: #{tpu_custom_call.1} parent=1 // pred_check_branch
      %42 = sbr.rel (0) target = $region21
    $region20: #{tpu_custom_call.1} parent=1 // pred_region
      %44 = dma.done [#allocation6], 256
    $region21: #{tpu_custom_call.1} parent=1 // pred_fallthru
      _
    %v45 = vld [vmem:[#allocation2] sm:$0x3]
    %v46 = vld [vmem:[#allocation5] sm:$0xff]
    %v47 = vld [vmem:[#allocation5 + $0x8] sm:$0x3]
    %v48 = vld [vmem:[%s2] sm:$0x1]
    %v49 = vmul.f32 %v45, %v45
    %vm50 = vcmask 74752
    %v51 = vsel %vm50, %v49, 0.0
    %52 = vadd.xlane.f32.xlu0 %v51
    %v53 = vpop.xlane.xlu0 %52
    %vm54 = vcmask 80896
    %v56 = vsel %vm54, %v45, 0
    %vm58 = vcmask 1041408
    %v60 = vsel %vm58, %v47, 0
    %62 = vmatpush.msra.mxu0 0.0
    %63 = vmatpush.msra.mxu0 0.0
    %64 = vmatpush.msra.mxu0 0.0
    %65 = vmatpush.msra.mxu0 0.0
    %66 = vmatpush.msra.mxu0 0.0
    %67 = vmatpush.msra.mxu0 0.0
    %68 = vmatpush.msra.mxu0 0.0
    %69 = vmatpush.msra.mxu0 0.0
    %70 = vmatpush.msra.mxu0 0.0
    %71 = vmatpush.msra.mxu0 0.0
    %72 = vmatpush.msra.mxu0 0.0
    %73 = vmatpush.msra.mxu0 0.0
    %74 = vmatpush.msra.mxu0 0.0
    %75 = vmatpush.msra.mxu0 0.0
    %76 = vmatpush.msra.mxu0 %v60
    %77 = vmatpush.msra.mxu0 %v46
    %78 = vmatmul.f32.gmra.mxu0 %v56
    %v79 = vpop.f32.mrf.mxu0
    %v80 = vadd.f32 0.0, %v79
    %81 = vdwg.mxu0
    %v83 = vperm.slane %v48, 0
    %v85 = vadd.f32 %v53, %v83
    %v86 = vmul.f32 %v80, 2.0
    %v87 = vsub.f32 %v85, %v86
    %v88 = vmax.f32 %v87, 0.0
    %v89 = vadd.f32 %v88, 1.0
    %v90 = vrcp.pop %v89
    %v91 = vsel %vm50, %v90, 0.0
    %92 = vadd.xlane.f32.xlu0 %v91
    %v93 = vpop.xlane.xlu0 %92
    %v94 = vrcp.pop %v93
    %v95 = vmul.f32 %v93, %v94
    %v96 = vsub.f32 1.0, %v95
    %v97 = vmul.f32 %v94, %v96
    %v98 = vadd.f32 %v94, %v97
    %vm99 = vweird.f32 %v93
    %vm100 = vweird.f32 %v94
    %vm101 = vmor %vm99, %vm100
    %v102 = vsel %vm101, %v94, %v98
    %v103 = vand.u32 2147483647, %v93
    %vm104 = vcmp.eq.f32.partialorder %v103, 8.507059e+37
    %v105 = vand.u32 %v93, 2147483648
    %v106 = vor.u32 1.1754944e-38, %v105
    %v107 = vsel %vm104, %v106, %v102
    %v108 = vmul.f32 %v90, %v107
    %109 = vst.msk [vmem:[#allocation7] sm:$0x3] %vm50, %v108
    // Predicated region
    $region22: #{tpu_custom_call.1} parent=1 // pred_check
      _
    $region23: #{tpu_custom_call.1} parent=1 // pred_check_branch
      %111 = sbr.rel (0) target = $region25
    $region24: #{tpu_custom_call.1} parent=1 // pred_region
      %113 = vsyncadd [#allocation4], 0
      %s115 = sshll.u32 [#allocation7], 4
      %s116 = int_to_ptr.vmem [resolvable:$true] %s115
      %s117 = sshll.u32 %s3, 4
      %s118 = int_to_ptr.hbm [resolvable:$true] %s117
      %120 = dma.vmem_to_hbm [thread:$0]  %s116, 32, %s118, [#allocation4]
    $region25: #{tpu_custom_call.1} parent=1 // pred_fallthru
      _
    // Predicated region
    $region26: #{tpu_custom_call.1} parent=1 // pred_check
      _
    $region27: #{tpu_custom_call.1} parent=1 // pred_check_branch
      %122 = sbr.rel (0) target = $region29
    $region28: #{tpu_custom_call.1} parent=1 // pred_region
      %124 = dma.done [#allocation4], 32
    $region29: #{tpu_custom_call.1} parent=1 // pred_fallthru
      _
    %125 = vsyncpa [#allocation3], 1
    %126 = vsyncpa [#allocation6], 1
    %127 = vsyncpa [#allocation4], 1

</llo_original>
